<compile_context>
chip_gen: v5e
topology: v5e:2x2
jax: 0.10.0
libtpu: 0.0.40
codegen_flags: <defaults>
</compile_context>

<pallas_src>
import jax
import jax.numpy as jnp
from jax.experimental import pallas as pl
from jax.experimental.pallas import tpu as pltpu

INPUT_DIM = 256
HIDDEN_DIM = 64
OUTPUT_DIM = 64

_SUBLANE = 8  # vreg sublane width


def _round_up(n, m):
    return ((n + m - 1) // m) * m


def ffn_kernel(x_ref, w1_ref, b1_ref, w2_ref, b2_ref, o_ref):
    # Cast the streamed f32 tile to the weight dtype in-kernel (VPU pass,
    # hidden under the DMA of the next tile).
    x_c = x_ref[...].astype(w1_ref.dtype)
    # fc1: (tm, 256) @ (256, 64) with f32 accumulation on the MXU.
    h = jnp.dot(x_c, w1_ref[...], preferred_element_type=jnp.float32)
    # bias + ReLU in f32 on the VPU.
    h = jnp.maximum(h + b1_ref[...], 0.0)
    # fc2: (tm, 64) @ (64, 64), again f32 accumulation.
    out = jnp.dot(h.astype(w2_ref.dtype), w2_ref[...],
                  preferred_element_type=jnp.float32)
    o_ref[...] = (out + b2_ref[...]).astype(o_ref.dtype)


def ffn_pallas(x, w1, b1, w2, b2, *, tm=2048, compute_dtype=jnp.bfloat16):
    """x: (B, 256) f32. w: (in, out) pre-transposed. b: (1, out).
    Returns (B, 64) in x.dtype."""
    B, D_in = x.shape
    D_hid = w1.shape[1]
    D_out = w2.shape[1]
    out_dtype = x.dtype

    # ---- row tile selection -------------------------------------------------
    # * sublane-aligned
    # * no bigger than the (rounded-up) batch
    # * no bigger than ceil(B/2) so the parallel axis has >=2 steps whenever
    #   the batch allows it (v7x megacore sharding).
    tm = max(_SUBLANE, _round_up(tm, _SUBLANE))
    b_ceil = _round_up(B, _SUBLANE)
    half_b = max(_round_up(pl.cdiv(B, 2), _SUBLANE), _SUBLANE)
    tm_eff = min(tm, b_ceil, half_b)
    grid = (pl.cdiv(B, tm_eff),)  # ragged last block handled by Pallas

    # Weights are tiny (~100 KB) and resident; casting them once is negligible.
    w1_c = w1.astype(compute_dtype)
    w2_c = w2.astype(compute_dtype)
    b1_f = b1.astype(jnp.float32)
    b2_f = b2.astype(jnp.float32)

    # Advisory cost estimate: real streamed bytes (x in, out out, weights once).
    flops = 2 * B * (D_in * D_hid + D_hid * D_out)
    bytes_accessed = (
        B * D_in * x.dtype.itemsize
        + B * D_out * jnp.dtype(out_dtype).itemsize
        + w1_c.size * w1_c.dtype.itemsize
        + w2_c.size * w2_c.dtype.itemsize
        + b1_f.size * 4
        + b2_f.size * 4
    )

    out = pl.pallas_call(
        ffn_kernel,
        out_shape=jax.ShapeDtypeStruct((B, D_out), out_dtype),
        grid_spec=pltpu.PrefetchScalarGridSpec(
            num_scalar_prefetch=0,
            grid=grid,
            in_specs=[
                # row tile of x marches down the batch axis (the only stream)
                pl.BlockSpec((tm_eff, D_in), lambda i: (i, 0)),
                # weights / biases: constant block index -> DMA'd once, resident
                pl.BlockSpec((D_in, D_hid), lambda i: (0, 0)),
                pl.BlockSpec((1, D_hid), lambda i: (0, 0)),
                pl.BlockSpec((D_hid, D_out), lambda i: (0, 0)),
                pl.BlockSpec((1, D_out), lambda i: (0, 0)),
            ],
            # last dim == full array dim (64), so no lane padding / no slice
            out_specs=pl.BlockSpec((tm_eff, D_out), lambda i: (i, 0)),
        ),
        compiler_params=pltpu.CompilerParams(
            dimension_semantics=("parallel",),
        ),
        cost_estimate=pl.CostEstimate(
            flops=flops, transcendentals=0, bytes_accessed=bytes_accessed
        ),
    )(x, w1_c, b1_f, w2_c, b2_f)

    return out


def init_linear_params(key, in_features, out_features):
    """Deterministic init mirroring torch.nn.Linear default:
    U(-1/sqrt(fan_in), 1/sqrt(fan_in)) for weight and bias.
    Weight is returned transposed as (in_features, out_features)."""
    k_w, k_b = jax.random.split(key)
    bound = 1.0 / jnp.sqrt(jnp.float32(in_features))
    w = jax.random.uniform(
        k_w, (in_features, out_features), jnp.float32, -bound, bound
    )
    b = jax.random.uniform(
        k_b, (1, out_features), jnp.float32, -bound, bound
    )
    return w, b


def ffn_reference(x, w1, b1, w2, b2):
    h = jnp.maximum(x @ w1 + b1, 0.0)
    return h @ w2 + b2


if __name__ == "__main__":
    key = jax.random.PRNGKey(0)
    k_x, k_fc1, k_fc2 = jax.random.split(key, 3)

    w1, b1 = init_linear_params(k_fc1, INPUT_DIM, HIDDEN_DIM)
    w2, b2 = init_linear_params(k_fc2, HIDDEN_DIM, OUTPUT_DIM)

    # Case 1: small, non-multiple-of-8 batch (exercises the ragged-block path).
    batch1 = 10
    x1 = jax.random.normal(k_x, (batch1, INPUT_DIM), jnp.float32)
    out1 = jax.block_until_ready(ffn_pallas(x1, w1, b1, w2, b2))
    ref1 = ffn_reference(x1, w1, b1, w2, b2)
    assert out1.shape == (batch1, OUTPUT_DIM)
    assert jnp.allclose(out1, ref1, atol=5e-2, rtol=5e-2), "mismatch vs ref (case 1)"

    # Case 2: explicit small tile -> multi-step grid + ragged tail block.
    batch2 = 20
    x2 = jax.random.normal(jax.random.PRNGKey(1), (batch2, INPUT_DIM), jnp.float32)
    out2 = jax.block_until_ready(ffn_pallas(x2, w1, b1, w2, b2, tm=8))
    ref2 = ffn_reference(x2, w1, b1, w2, b2)
    assert out2.shape == (batch2, OUTPUT_DIM)
    assert jnp.allclose(out2, ref2, atol=5e-2, rtol=5e-2), "mismatch vs ref (case 2)"

    # Case 3: batch that divides evenly into >=2 tiles (megacore-style split).
    batch3 = 64
    x3 = jax.random.normal(jax.random.PRNGKey(2), (batch3, INPUT_DIM), jnp.float32)
    out3 = jax.block_until_ready(ffn_pallas(x3, w1, b1, w2, b2))
    ref3 = ffn_reference(x3, w1, b1, w2, b2)
    assert out3.shape == (batch3, OUTPUT_DIM)
    assert jnp.allclose(out3, ref3, atol=5e-2, rtol=5e-2), "mismatch vs ref (case 3)"

    print("KERNEL_OK")
</pallas_src>

<mosaic_0001>
module attributes {stable_mosaic.version = 11 : i64} {
  func.func @ffn_kernel(%arg0: i32, %arg1: memref<8x256xf32, #tpu.memory_space<vmem>>, %arg2: memref<256x64xbf16, #tpu.memory_space<vmem>>, %arg3: memref<1x64xf32, #tpu.memory_space<vmem>>, %arg4: memref<64x64xbf16, #tpu.memory_space<vmem>>, %arg5: memref<1x64xf32, #tpu.memory_space<vmem>>, %arg6: memref<8x64xf32, #tpu.memory_space<vmem>>) attributes {dimension_semantics = [#tpu.dimension_semantics<parallel>], iteration_bounds = array<i64: 2>, scalar_prefetch = 0 : i64, scratch_operands = 0 : i64, tpu.core_type = #tpu.core_type<tc>, window_params = [{transform_indices = @transform_0, window_bounds = array<i64: 8, 256>}, {pipeline_mode = #tpu.pipeline_mode<synchronous>, transform_indices = @transform_1, window_bounds = array<i64: 256, 64>}, {pipeline_mode = #tpu.pipeline_mode<synchronous>, transform_indices = @transform_2, window_bounds = array<i64: 1, 64>}, {pipeline_mode = #tpu.pipeline_mode<synchronous>, transform_indices = @transform_3, window_bounds = array<i64: 64, 64>}, {pipeline_mode = #tpu.pipeline_mode<synchronous>, transform_indices = @transform_4, window_bounds = array<i64: 1, 64>}, {transform_indices = @transform_5, window_bounds = array<i64: 8, 64>}]} {
    %c0 = arith.constant 0 : index
    %c0_0 = arith.constant 0 : index
    %0 = vector.load %arg1[%c0, %c0_0] : memref<8x256xf32, #tpu.memory_space<vmem>>, vector<8x256xf32>
    %1 = arith.truncf %0 : vector<8x256xf32> to vector<8x256xbf16>
    %c0_1 = arith.constant 0 : index
    %c0_2 = arith.constant 0 : index
    %2 = vector.load %arg2[%c0_1, %c0_2] : memref<256x64xbf16, #tpu.memory_space<vmem>>, vector<256x64xbf16>
    %cst = arith.constant dense<0.000000e+00> : vector<8x64xf32>
    %3 = tpu.matmul %1, %2, %cst {dimension_numbers = #tpu.dot_dimension_numbers<[1], [0], [0], [1], [0, 0, 1, 1], [], []>} : vector<8x256xbf16>, vector<256x64xbf16>, vector<8x64xf32> -> vector<8x64xf32>
    %c0_3 = arith.constant 0 : index
    %c0_4 = arith.constant 0 : index
    %4 = vector.load %arg3[%c0_3, %c0_4] : memref<1x64xf32, #tpu.memory_space<vmem>>, vector<1x64xf32>
    %5 = vector.broadcast %4 : vector<1x64xf32> to vector<8x64xf32>
    %6 = arith.addf %3, %5 : vector<8x64xf32>
    %cst_5 = arith.constant 0.000000e+00 : f32
    %7 = vector.broadcast %cst_5 : f32 to vector<8x64xf32>
    %8 = arith.maximumf %6, %7 : vector<8x64xf32>
    %9 = arith.truncf %8 : vector<8x64xf32> to vector<8x64xbf16>
    %c0_6 = arith.constant 0 : index
    %c0_7 = arith.constant 0 : index
    %10 = vector.load %arg4[%c0_6, %c0_7] : memref<64x64xbf16, #tpu.memory_space<vmem>>, vector<64x64xbf16>
    %cst_8 = arith.constant dense<0.000000e+00> : vector<8x64xf32>
    %11 = tpu.matmul %9, %10, %cst_8 {dimension_numbers = #tpu.dot_dimension_numbers<[1], [0], [0], [1], [0, 0, 1, 1], [], []>} : vector<8x64xbf16>, vector<64x64xbf16>, vector<8x64xf32> -> vector<8x64xf32>
    %c0_9 = arith.constant 0 : index
    %c0_10 = arith.constant 0 : index
    %12 = vector.load %arg5[%c0_9, %c0_10] : memref<1x64xf32, #tpu.memory_space<vmem>>, vector<1x64xf32>
    %13 = vector.broadcast %12 : vector<1x64xf32> to vector<8x64xf32>
    %14 = arith.addf %11, %13 : vector<8x64xf32>
    %c0_11 = arith.constant 0 : index
    %c0_12 = arith.constant 0 : index
    %15 = vector.load %arg6[%c0_11, %c0_12] : memref<8x64xf32, #tpu.memory_space<vmem>>, vector<8x64xf32>
    tpu.vector_store %arg6[%c0_11, %c0_12], %14 {strides = array<i32>} : memref<8x64xf32, #tpu.memory_space<vmem>>, vector<8x64xf32>,
    return
  }
  func.func @transform_0(%arg0: i32) -> (i32, i32) {
    %c0_i32 = arith.constant 0 : i32
    %c0_i32_0 = arith.constant 0 : i32
    return %arg0, %c0_i32 : i32, i32
  }
  func.func @transform_1(%arg0: i32) -> (i32, i32) {
    %c0_i32 = arith.constant 0 : i32
    %c0_i32_0 = arith.constant 0 : i32
    %c0_i32_1 = arith.constant 0 : i32
    return %c0_i32, %c0_i32_0 : i32, i32
  }
  func.func @transform_2(%arg0: i32) -> (i32, i32) {
    %c0_i32 = arith.constant 0 : i32
    %c0_i32_0 = arith.constant 0 : i32
    %c0_i32_1 = arith.constant 0 : i32
    return %c0_i32, %c0_i32_0 : i32, i32
  }
  func.func @transform_3(%arg0: i32) -> (i32, i32) {
    %c0_i32 = arith.constant 0 : i32
    %c0_i32_0 = arith.constant 0 : i32
    %c0_i32_1 = arith.constant 0 : i32
    return %c0_i32, %c0_i32_0 : i32, i32
  }
  func.func @transform_4(%arg0: i32) -> (i32, i32) {
    %c0_i32 = arith.constant 0 : i32
    %c0_i32_0 = arith.constant 0 : i32
    %c0_i32_1 = arith.constant 0 : i32
    return %c0_i32, %c0_i32_0 : i32, i32
  }
  func.func @transform_5(%arg0: i32) -> (i32, i32) {
    %c0_i32 = arith.constant 0 : i32
    %c0_i32_0 = arith.constant 0 : i32
    return %arg0, %c0_i32 : i32, i32
  }
}

</mosaic_0001>

<llo_original>
// kernel: tpu_custom_call.1
$region0: #{tpu_custom_call.1}
  #allocation0 [shape = 'u32[]', space=smem, size = 0x4, offset = 0x4, fixed_abs, tag = 'smem constant byte address 0x4 - core index']
  #allocation1 [shape = 'u32[72,128]{1,0:T(1,128)}', space=vmem, size = 0x9000, scoped, tag = 'internal scratch']
  %s0 = inlined_call_operand.vmem [shape: f32[10,256], index: 0, kind: input, shape index: {}]
  %s1 = inlined_call_operand.vmem [shape: bf16[256,64], index: 1, kind: input, shape index: {}]
  %s2 = inlined_call_operand.vmem [shape: f32[1,64], index: 2, kind: input, shape index: {}]
  %s3 = inlined_call_operand.vmem [shape: bf16[64,64], index: 3, kind: input, shape index: {}]
  %s4 = inlined_call_operand.vmem [shape: f32[1,64], index: 4, kind: input, shape index: {}]
  %s5 = inlined_call_operand.hbm [shape: f32[10,64], index: 5, kind: output, shape index: {}]
  %s6 = sld [smem:[#allocation0]]
  $region53: #{tpu_custom_call.1} parent=0
    _
  %s8 = ssub.s32 1, %s6
  %s9 = scalar_select 0, %s8, %s6
  $region1: #{tpu_custom_call.1} parent=0
    #allocation2 [shape = 'u8[8192]{0}', space=vmem, size = 0x2000, scoped, tag = 'output window, operand 0']
    #allocation3 [shape = 's32[2]{0}', space=sflag, size = 0x8, scoped, tag = 'scoped memory for tpu_custom_call.1']
    %10 = vsyncpa [#allocation3], 0
    %s11 = scalar_lea.sflag [#allocation3], 1
    %12 = vsyncpa %s11, 0
    loop: start=0, step=1, limit=4
    $region2: #{tpu_custom_call.1} parent=1 // loop_pre_header
      _
    $region3: #{tpu_custom_call.1} parent=1 // loop_header
      %s14 = sphi 0, %s18
      %p15 = scmp.ge.s32.totalorder %s14, 4
      %s24 = sphi 0, %s26
      %s27 = sphi 0, %s24
      %s28 = sphi 0, %s27
      %s44 = sphi 0, %s28
      %s48 = sphi 0, %s48
      %s50 = sphi 0, %s48
      %s51 = sphi 0, %s50
      %s65 = sphi 0, %s51
      %s69 = sphi 0, %s69
      %s71 = sphi 0, %s69
      %s72 = sphi 0, %s71
      %s86 = sphi 0, %s72
      %s90 = sphi 0, %s90
      %s92 = sphi 0, %s90
      %s93 = sphi 0, %s92
      %s107 = sphi 0, %s93
      %s111 = sphi 0, %s111
      %s113 = sphi 0, %s111
      %s114 = sphi 0, %s113
      %s128 = sphi 0, %s114
      %s134 = sphi 0, %s136
      %s137 = sphi 0, %s134
      %s138 = sphi 0, %s137
      %s154 = sphi 0, %s138
    $region4: #{tpu_custom_call.1} parent=1 // loop_header_branch
      %17 = sbr.rel (%p15) target = $region8
    $region5: #{tpu_custom_call.1} parent=1 // loop_body
      %s19 = ssub.s32 %s14, 1
      %s20 = ssub.s32 %s14, 2
      %s21 = sadd.s32 %s14, 1
      %s22 = ssub.s32 %s14, %s21
      %p23 = scmp.eq.s32.totalorder %s22, 0
      %s25 = sadd.s32 %s24, 1
      %s26 = scalar_select %p23, %s24, %s25
      %p29 = pneg %p23
      %p30 = scmp.eq.s32.totalorder %s14, 1
      %p31 = por %p29, %p30
      %p32 = scmp.ne.s32.totalorder %s24, %s27
      %p33 = scmp.eq.s32.totalorder %s14, 0
      %p34 = por %p32, %p33
      %p35 = scmp.ne.s32.totalorder %s24, %s27
      %p36 = scmp.eq.s32.totalorder %s19, 1
      %p37 = por %p35, %p36
      %p38 = scmp.ne.s32.totalorder %s27, %s28
      %p39 = scmp.eq.s32.totalorder %s19, 0
      %p40 = por %p38, %p39
      %p41 = scmp.ne.s32.totalorder %s27, %s28
      %p42 = scmp.eq.s32.totalorder %s20, 1
      %p43 = por %p41, %p42
      %p45 = scmp.ne.s32.totalorder %s28, %s44
      %p46 = scmp.eq.s32.totalorder %s20, 0
      %p47 = por %p45, %p46
      %s49 = sadd.s32 %s48, 1
      %p52 = scmp.eq.s32.totalorder %s14, 1
      %p53 = scmp.ne.s32.totalorder %s48, %s50
      %p54 = scmp.eq.s32.totalorder %s14, 0
      %p55 = por %p53, %p54
      %p56 = scmp.ne.s32.totalorder %s48, %s50
      %p57 = scmp.eq.s32.totalorder %s19, 1
      %p58 = por %p56, %p57
      %p59 = scmp.ne.s32.totalorder %s50, %s51
      %p60 = scmp.eq.s32.totalorder %s19, 0
      %p61 = por %p59, %p60
      %p62 = scmp.ne.s32.totalorder %s50, %s51
      %p63 = scmp.eq.s32.totalorder %s20, 1
      %p64 = por %p62, %p63
      %p66 = scmp.ne.s32.totalorder %s51, %s65
      %p67 = scmp.eq.s32.totalorder %s20, 0
      %p68 = por %p66, %p67
      %s70 = sadd.s32 %s69, 1
      %p73 = scmp.eq.s32.totalorder %s14, 1
      %p74 = scmp.ne.s32.totalorder %s69, %s71
      %p75 = scmp.eq.s32.totalorder %s14, 0
      %p76 = por %p74, %p75
      %p77 = scmp.ne.s32.totalorder %s69, %s71
      %p78 = scmp.eq.s32.totalorder %s19, 1
      %p79 = por %p77, %p78
      %p80 = scmp.ne.s32.totalorder %s71, %s72
      %p81 = scmp.eq.s32.totalorder %s19, 0
      %p82 = por %p80, %p81
      %p83 = scmp.ne.s32.totalorder %s71, %s72
      %p84 = scmp.eq.s32.totalorder %s20, 1
      %p85 = por %p83, %p84
      %p87 = scmp.ne.s32.totalorder %s72, %s86
      %p88 = scmp.eq.s32.totalorder %s20, 0
      %p89 = por %p87, %p88
      %s91 = sadd.s32 %s90, 1
      %p94 = scmp.eq.s32.totalorder %s14, 1
      %p95 = scmp.ne.s32.totalorder %s90, %s92
      %p96 = scmp.eq.s32.totalorder %s14, 0
      %p97 = por %p95, %p96
      %p98 = scmp.ne.s32.totalorder %s90, %s92
      %p99 = scmp.eq.s32.totalorder %s19, 1
      %p100 = por %p98, %p99
      %p101 = scmp.ne.s32.totalorder %s92, %s93
      %p102 = scmp.eq.s32.totalorder %s19, 0
      %p103 = por %p101, %p102
      %p104 = scmp.ne.s32.totalorder %s92, %s93
      %p105 = scmp.eq.s32.totalorder %s20, 1
      %p106 = por %p104, %p105
      %p108 = scmp.ne.s32.totalorder %s93, %s107
      %p109 = scmp.eq.s32.totalorder %s20, 0
      %p110 = por %p108, %p109
      %s112 = sadd.s32 %s111, 1
      %p115 = scmp.eq.s32.totalorder %s14, 1
      %p116 = scmp.ne.s32.totalorder %s111, %s113
      %p117 = scmp.eq.s32.totalorder %s14, 0
      %p118 = por %p116, %p117
      %p119 = scmp.ne.s32.totalorder %s111, %s113
      %p120 = scmp.eq.s32.totalorder %s19, 1
      %p121 = por %p119, %p120
      %p122 = scmp.ne.s32.totalorder %s113, %s114
      %p123 = scmp.eq.s32.totalorder %s19, 0
      %p124 = por %p122, %p123
      %p125 = scmp.ne.s32.totalorder %s113, %s114
      %p126 = scmp.eq.s32.totalorder %s20, 1
      %p127 = por %p125, %p126
      %p129 = scmp.ne.s32.totalorder %s114, %s128
      %p130 = scmp.eq.s32.totalorder %s20, 0
      %p131 = por %p129, %p130
      %s132 = ssub.s32 %s14, %s21
      %p133 = scmp.eq.s32.totalorder %s132, 0
      %s135 = sadd.s32 %s134, 1
      %s136 = scalar_select %p133, %s134, %s135
      %p139 = pneg %p133
      %p140 = scmp.eq.s32.totalorder %s14, 1
      %p141 = por %p139, %p140
      %p142 = scmp.ne.s32.totalorder %s134, %s137
      %p143 = scmp.eq.s32.totalorder %s14, 0
      %p144 = por %p142, %p143
      %p145 = scmp.ne.s32.totalorder %s134, %s137
      %p146 = scmp.eq.s32.totalorder %s19, 1
      %p147 = por %p145, %p146
      %p148 = scmp.ne.s32.totalorder %s137, %s138
      %p149 = scmp.eq.s32.totalorder %s19, 0
      %p150 = por %p148, %p149
      %p151 = scmp.ne.s32.totalorder %s137, %s138
      %p152 = scmp.eq.s32.totalorder %s20, 1
      %p153 = por %p151, %p152
      %p155 = scmp.ne.s32.totalorder %s138, %s154
      %p156 = scmp.eq.s32.totalorder %s20, 0
      %p157 = por %p155, %p156
      %p158 = scmp.le.s32.totalorder 1, %s14
      %p159 = scmp.lt.s32.totalorder %s14, 3
      %p160 = pnand %p158, %p159
      %p161 = pneg %p160
      // Predicated region
      $region9: #{tpu_custom_call.1} parent=5 // pred_check
        _
      $region10: #{tpu_custom_call.1} parent=5 // pred_check_branch
        %163 = sbr.rel (%p160) target = $region12
      $region11: #{tpu_custom_call.1} parent=5 // pred_region
        %s164 = ssub.s32 %s14, 1
        // Predicated region
        $region13: #{tpu_custom_call.1} parent=11 // pred_check
          %p165 = pneg %p61
        $region14: #{tpu_custom_call.1} parent=11 // pred_check_branch
          %167 = sbr.rel (%p165) target = $region16
        $region15: #{tpu_custom_call.1} parent=11 // pred_region
          _
        $region16: #{tpu_custom_call.1} parent=11 // pred_fallthru
          _
        // Predicated region
        $region17: #{tpu_custom_call.1} parent=11 // pred_check
          %p168 = pneg %p82
        $region18: #{tpu_custom_call.1} parent=11 // pred_check_branch
          %170 = sbr.rel (%p168) target = $region20
        $region19: #{tpu_custom_call.1} parent=11 // pred_region
          _
        $region20: #{tpu_custom_call.1} parent=11 // pred_fallthru
          _
        // Predicated region
        $region21: #{tpu_custom_call.1} parent=11 // pred_check
          %p171 = pneg %p103
        $region22: #{tpu_custom_call.1} parent=11 // pred_check_branch
          %173 = sbr.rel (%p171) target = $region24
        $region23: #{tpu_custom_call.1} parent=11 // pred_region
          _
        $region24: #{tpu_custom_call.1} parent=11 // pred_fallthru
          _
        // Predicated region
        $region25: #{tpu_custom_call.1} parent=11 // pred_check
          %p174 = pneg %p124
        $region26: #{tpu_custom_call.1} parent=11 // pred_check_branch
          %176 = sbr.rel (%p174) target = $region28
        $region27: #{tpu_custom_call.1} parent=11 // pred_region
          _
        $region28: #{tpu_custom_call.1} parent=11 // pred_fallthru
          _
      $region12: #{tpu_custom_call.1} parent=5 // pred_fallthru
        _
      %p177 = scmp.lt.s32.totalorder %s14, 2
      // Predicated region
      $region29: #{tpu_custom_call.1} parent=5 // pred_check
        %p178 = pneg %p177
      $region30: #{tpu_custom_call.1} parent=5 // pred_check_branch
        %180 = sbr.rel (%p178) target = $region32
      $region31: #{tpu_custom_call.1} parent=5 // pred_region
        // Predicated region
        $region33: #{tpu_custom_call.1} parent=31 // pred_check
          %p181 = pneg %p34
        $region34: #{tpu_custom_call.1} parent=31 // pred_check_branch
          %183 = sbr.rel (%p181) target = $region36
        $region35: #{tpu_custom_call.1} parent=31 // pred_region
          %p184 = scmp.lt.s32.totalorder %s14, 1
          %s185 = scalar_select %p184, %s14, 1
          %s186 = smul.addr %s185, 2
          %s187 = smul.addr %s186, 8
          %s188 = scalar_lea.vmem %s0, %s187
        $region36: #{tpu_custom_call.1} parent=31 // pred_fallthru
          _
      $region32: #{tpu_custom_call.1} parent=5 // pred_fallthru
        _
      %p189 = scmp.le.s32.totalorder 1, %s14
      %p190 = scmp.lt.s32.totalorder %s14, 3
      %p191 = pnand %p189, %p190
      %p192 = pneg %p191
      // Predicated region
      $region37: #{tpu_custom_call.1} parent=5 // pred_check
        _
      $region38: #{tpu_custom_call.1} parent=5 // pred_check_branch
        %194 = sbr.rel (%p191) target = $region40
      $region39: #{tpu_custom_call.1} parent=5 // pred_region
        %s195 = ssub.s32 %s14, 1
        %p196 = scmp.lt.s32.totalorder %s19, 1
        %s197 = scalar_select %p196, %s19, 1
        %s198 = smul.addr %s197, 2
        %s199 = smul.addr %s198, 8
        %s200 = scalar_lea.vmem %s0, %s199
        %p201 = pneg %p40
        %p202 = pneg %p37
        %p203 = pneg %p61
        %p204 = pneg %p58
        %p205 = pneg %p82
        %p206 = pneg %p79
        %p207 = pneg %p103
        %p208 = pneg %p100
        %p209 = pneg %p124
        %p210 = pneg %p121
        %p211 = pneg %p150
        %p212 = pneg %p147
        %s213 = sand.u32 %s137, 1
        %s214 = scalar_lea.sflag [#allocation3], %s213
        %s215 = sand.u32 %s137, 1
        %s216 = smul.addr %s215, 8
        %s217 = scalar_lea.vmem [#allocation2], %s216
        %p218 = scmp.lt.s32.totalorder %s19, 1
        %s219 = scalar_select %p218, %s19, 1
        %s220 = smul.addr %s219, 2
        %s221 = smul.addr %s220, 8
        %s222 = scalar_lea.vmem %s0, %s221
        %v224 = vld [vmem:[%s222] sm:$0xff]
        %v225 = vld [vmem:[%s222 + $0x8] sm:$0xff]
        %v226 = vpack.c.bf16 %v224, %v224
        %v227 = vpack.c.bf16 %v225, %v225
        %v228 = vld [vmem:[%s1] sm:$0xf]
        %v229 = vld [vmem:[%s1 + $0x4] sm:$0xf]
        %v230 = vld [vmem:[%s1 + $0x8] sm:$0xf]
        %v231 = vld [vmem:[%s1 + $0xc] sm:$0xf]
        %v232 = vld [vmem:[%s1 + $0x10] sm:$0xf]
        %v233 = vld [vmem:[%s1 + $0x14] sm:$0xf]
        %v234 = vld [vmem:[%s1 + $0x18] sm:$0xf]
        %v235 = vld [vmem:[%s1 + $0x1c] sm:$0xf]
        %v236 = vld [vmem:[%s1 + $0x20] sm:$0xf]
        %v237 = vld [vmem:[%s1 + $0x24] sm:$0xf]
        %v238 = vld [vmem:[%s1 + $0x28] sm:$0xf]
        %v239 = vld [vmem:[%s1 + $0x2c] sm:$0xf]
        %v240 = vld [vmem:[%s1 + $0x30] sm:$0xf]
        %v241 = vld [vmem:[%s1 + $0x34] sm:$0xf]
        %v242 = vld [vmem:[%s1 + $0x38] sm:$0xf]
        %v243 = vld [vmem:[%s1 + $0x3c] sm:$0xf]
        %v244 = vld [vmem:[%s1 + $0x40] sm:$0xf]
        %v245 = vld [vmem:[%s1 + $0x44] sm:$0xf]
        %v246 = vld [vmem:[%s1 + $0x48] sm:$0xf]
        %v247 = vld [vmem:[%s1 + $0x4c] sm:$0xf]
        %v248 = vld [vmem:[%s1 + $0x50] sm:$0xf]
        %v249 = vld [vmem:[%s1 + $0x54] sm:$0xf]
        %v250 = vld [vmem:[%s1 + $0x58] sm:$0xf]
        %v251 = vld [vmem:[%s1 + $0x5c] sm:$0xf]
        %v252 = vld [vmem:[%s1 + $0x60] sm:$0xf]
        %v253 = vld [vmem:[%s1 + $0x64] sm:$0xf]
        %v254 = vld [vmem:[%s1 + $0x68] sm:$0xf]
        %v255 = vld [vmem:[%s1 + $0x6c] sm:$0xf]
        %v256 = vld [vmem:[%s1 + $0x70] sm:$0xf]
        %v257 = vld [vmem:[%s1 + $0x74] sm:$0xf]
        %v258 = vld [vmem:[%s1 + $0x78] sm:$0xf]
        %v259 = vld [vmem:[%s1 + $0x7c] sm:$0xf]
        %v260 = vld [vmem:[%s2] sm:$0x1]
        %v262 = vperm.slane %v260, 0
        %v296 = vunpack.c.l.b16 %v228
        %v297 = vunpack.c.l.b16 %v229
        %v298 = vunpack.c.l.b16 %v230
        %v299 = vunpack.c.l.b16 %v231
        %v300 = vunpack.c.l.b16 %v232
        %v301 = vunpack.c.l.b16 %v233
        %v302 = vunpack.c.l.b16 %v234
        %v303 = vunpack.c.l.b16 %v235
        %v304 = vunpack.c.l.b16 %v236
        %v305 = vunpack.c.l.b16 %v237
        %v306 = vunpack.c.l.b16 %v238
        %v307 = vunpack.c.l.b16 %v239
        %v308 = vunpack.c.l.b16 %v240
        %v309 = vunpack.c.l.b16 %v241
        %v310 = vunpack.c.l.b16 %v242
        %v311 = vunpack.c.l.b16 %v243
        %v312 = vunpack.c.l.b16 %v244
        %v313 = vunpack.c.l.b16 %v245
        %v314 = vunpack.c.l.b16 %v246
        %v315 = vunpack.c.l.b16 %v247
        %v316 = vunpack.c.l.b16 %v248
        %v317 = vunpack.c.l.b16 %v249
        %v318 = vunpack.c.l.b16 %v250
        %v319 = vunpack.c.l.b16 %v251
        %v320 = vunpack.c.l.b16 %v252
        %v321 = vunpack.c.l.b16 %v253
        %v322 = vunpack.c.l.b16 %v254
        %v323 = vunpack.c.l.b16 %v255
        %v324 = vunpack.c.l.b16 %v256
        %v325 = vunpack.c.l.b16 %v257
        %v326 = vunpack.c.l.b16 %v258
        %v327 = vunpack.c.l.b16 %v259
        %v328 = vpack.c.b16 %v297, %v296
        %v329 = vpack.c.b16 %v299, %v298
        %v330 = vpack.c.b16 %v301, %v300
        %v331 = vpack.c.b16 %v303, %v302
        %v332 = vpack.c.b16 %v305, %v304
        %v333 = vpack.c.b16 %v307, %v306
        %v334 = vpack.c.b16 %v309, %v308
        %v335 = vpack.c.b16 %v311, %v310
        %v336 = vpack.c.b16 %v313, %v312
        %v337 = vpack.c.b16 %v315, %v314
        %v338 = vpack.c.b16 %v317, %v316
        %v339 = vpack.c.b16 %v319, %v318
        %v340 = vpack.c.b16 %v321, %v320
        %v341 = vpack.c.b16 %v323, %v322
        %v342 = vpack.c.b16 %v325, %v324
        %v343 = vpack.c.b16 %v327, %v326
        %360 = vmatpush.bf16.msra.mxu0 %v335
        %361 = vmatpush.bf16.msra.mxu0 %v334
        %362 = vmatpush.bf16.msra.mxu0 %v333
        %363 = vmatpush.bf16.msra.mxu0 %v332
        %364 = vmatpush.bf16.msra.mxu0 %v331
        %365 = vmatpush.bf16.msra.mxu0 %v330
        %366 = vmatpush.bf16.msra.mxu0 %v329
        %367 = vmatpush.bf16.msra.mxu0 %v328
        %368 = vmatmul.bf16.gmra.mxu0 %v226
        %v369 = vpop.f32.mrf.mxu0
        %v370 = vadd.f32 %v262, %v369
        %v371 = vpop.f32.mrf.mxu0
        %372 = vdwg.mxu0
        %373 = vmatpush.bf16.msra.mxu0 %v343
        %374 = vmatpush.bf16.msra.mxu0 %v342
        %375 = vmatpush.bf16.msra.mxu0 %v341
        %376 = vmatpush.bf16.msra.mxu0 %v340
        %377 = vmatpush.bf16.msra.mxu0 %v339
        %378 = vmatpush.bf16.msra.mxu0 %v338
        %379 = vmatpush.bf16.msra.mxu0 %v337
        %380 = vmatpush.bf16.msra.mxu0 %v336
        %381 = vmatmul.bf16.gmra.mxu0 %v227
        %v382 = vpop.f32.mrf.mxu0
        %v383 = vadd.f32 %v370, %v382
        %v384 = vpop.f32.mrf.mxu0
        %385 = vdwg.mxu0
        %v386 = vmax.f32 %v383, 0.0
        %v387 = vpack.c.bf16 %v386, %v386
        %v388 = vld [vmem:[%s3] sm:$0xf]
        %v389 = vld [vmem:[%s3 + $0x4] sm:$0xf]
        %v390 = vld [vmem:[%s3 + $0x8] sm:$0xf]
        %v391 = vld [vmem:[%s3 + $0xc] sm:$0xf]
        %v392 = vld [vmem:[%s3 + $0x10] sm:$0xf]
        %v393 = vld [vmem:[%s3 + $0x14] sm:$0xf]
        %v394 = vld [vmem:[%s3 + $0x18] sm:$0xf]
        %v395 = vld [vmem:[%s3 + $0x1c] sm:$0xf]
        %v396 = vld [vmem:[%s4] sm:$0x1]
        %v398 = vperm.slane %v396, 0
        %v408 = vunpack.c.l.b16 %v388
        %v409 = vunpack.c.l.b16 %v389
        %v410 = vunpack.c.l.b16 %v390
        %v411 = vunpack.c.l.b16 %v391
        %v412 = vunpack.c.l.b16 %v392
        %v413 = vunpack.c.l.b16 %v393
        %v414 = vunpack.c.l.b16 %v394
        %v415 = vunpack.c.l.b16 %v395
        %v416 = vpack.c.b16 %v409, %v408
        %v417 = vpack.c.b16 %v411, %v410
        %v418 = vpack.c.b16 %v413, %v412
        %v419 = vpack.c.b16 %v415, %v414
        %vm424 = vcmask 523264
        %v426 = vsel %vm424, %v387, 0
        %428 = vmatpush.bf16.msra.mxu0 0
        %429 = vmatpush.bf16.msra.mxu0 0
        %430 = vmatpush.bf16.msra.mxu0 0
        %431 = vmatpush.bf16.msra.mxu0 0
        %432 = vmatpush.bf16.msra.mxu0 %v419
        %433 = vmatpush.bf16.msra.mxu0 %v418
        %434 = vmatpush.bf16.msra.mxu0 %v417
        %435 = vmatpush.bf16.msra.mxu0 %v416
        %436 = vmatmul.bf16.gmra.mxu0 %v426
        %v437 = vpop.f32.mrf.mxu0
        %v438 = vadd.f32 %v398, %v437
        %v439 = vpop.f32.mrf.mxu0
        %440 = vdwg.mxu0
        %441 = vst.msk [vmem:[%s217] sm:$0xff] %vm424, %v438
        %s442 = sand.u32 %s137, 1
        %s443 = scalar_lea.sflag [#allocation3], %s442
        %s444 = sand.u32 %s137, 1
        %s445 = smul.addr %s444, 8
        %s446 = scalar_lea.vmem [#allocation2], %s445
        // Predicated region
        $region41: #{tpu_custom_call.1} parent=39 // pred_check
          %p447 = pneg %p147
        $region42: #{tpu_custom_call.1} parent=39 // pred_check_branch
          %449 = sbr.rel (%p447) target = $region44
        $region43: #{tpu_custom_call.1} parent=39 // pred_region
          %451 = vsyncadd %s443, 0
          %s452 = smul.addr %s19, 8
          %s453 = scalar_lea.hbm %s5, %s452
          %s455 = sshll.u32 %s446, 4
          %s456 = int_to_ptr.vmem [resolvable:$true] %s455
          %s457 = sshll.u32 %s453, 4
          %s458 = int_to_ptr.hbm [resolvable:$true] %s457
          %460 = dma.vmem_to_hbm [thread:$0]  %s456, 128, %s458, %s443
        $region44: #{tpu_custom_call.1} parent=39 // pred_fallthru
          _
      $region40: #{tpu_custom_call.1} parent=5 // pred_fallthru
        _
      %p461 = scmp.le.s32.totalorder 2, %s14
      // Predicated region
      $region45: #{tpu_custom_call.1} parent=5 // pred_check
        %p462 = pneg %p461
      $region46: #{tpu_custom_call.1} parent=5 // pred_check_branch
        %464 = sbr.rel (%p462) target = $region48
      $region47: #{tpu_custom_call.1} parent=5 // pred_region
        %s465 = ssub.s32 %s14, 2
        // Predicated region
        $region49: #{tpu_custom_call.1} parent=47 // pred_check
          %p466 = pneg %p153
        $region50: #{tpu_custom_call.1} parent=47 // pred_check_branch
          %468 = sbr.rel (%p466) target = $region52
        $region51: #{tpu_custom_call.1} parent=47 // pred_region
          %s469 = sand.u32 %s138, 1
          %s470 = scalar_lea.sflag [#allocation3], %s469
          %s471 = sand.u32 %s138, 1
          %s472 = smul.addr %s471, 8
          %s473 = scalar_lea.vmem [#allocation2], %s472
          %475 = dma.done %s470, 128
        $region52: #{tpu_custom_call.1} parent=47 // pred_fallthru
          _
      $region48: #{tpu_custom_call.1} parent=5 // pred_fallthru
        _
    $region6: #{tpu_custom_call.1} parent=1 // loop_footer
      %s18 = sadd.s32 1, %s14
    $region7: #{tpu_custom_call.1} parent=1 // loop_footer_branch
      %13 = sbr.rel target = $region3
    $region8: #{tpu_custom_call.1} parent=1 // loop_exit
      _
    %476 = vsyncpa [#allocation3], 1
    %s477 = scalar_lea.sflag [#allocation3], 1
    %478 = vsyncpa %s477, 1

</llo_original>
